<compile_context>
chip_gen: v5e
topology: v5e:2x2
jax: 0.10.0
libtpu: 0.0.40
codegen_flags: <defaults>
</compile_context>

<pallas_src>
import functools

import jax
import jax.numpy as jnp
from jax.experimental import pallas as pl
from jax.experimental.pallas import tpu as pltpu


def _round_up(x, m):
    return ((x + m - 1) // m) * m


def _mlp_kernel(x_ref, w1_ref, b1_ref, w2_ref, b2_ref, o_ref):
    # [TB, I] @ [I, H] -> f32 accumulation on the MXU.
    h = jnp.dot(x_ref[...], w1_ref[...], preferred_element_type=jnp.float32)
    # Bias + ReLU on the VPU (f32).
    h = jnp.maximum(h + b1_ref[...], 0.0)
    # [TB, H] @ [H, O_pad] -> f32; extra O_pad columns are zeros from the
    # zero-padded w2/b2 and are sliced off in the (jitted) wrapper.
    out = jnp.dot(h, w2_ref[...], preferred_element_type=jnp.float32)
    o_ref[...] = (out + b2_ref[...]).astype(o_ref.dtype)


def prepare_params(w1, b1, w2, b2):
    """One-time parameter prep (call at init / after each optimizer step,
    NOT per forward call):
      * everything in f32,
      * w2/b2 zero-padded so the output dim is a multiple of 128 lanes
        (lane-dense, unmasked stores in the kernel),
      * biases reshaped to 2-D rows for in-kernel broadcasting.
    Weights are stored [in, out] (transposed relative to torch.nn.Linear)."""
    out_size = w2.shape[1]
    o_pad = _round_up(out_size, 128)
    w1_p = w1.astype(jnp.float32)
    b1_2d = b1.astype(jnp.float32).reshape(1, -1)
    w2_p = jnp.pad(w2.astype(jnp.float32), ((0, 0), (0, o_pad - out_size)))
    b2_p = jnp.pad(b2.astype(jnp.float32), (0, o_pad - out_size)).reshape(1, o_pad)
    return w1_p, b1_2d, w2_p, b2_p


@functools.partial(jax.jit, static_argnames=("out_size", "block_b"))
def linear_qnet_forward(x, w1, b1_2d, w2_p, b2_p, *, out_size, block_b=None):
    """Forward pass of LinearQNet: relu(x @ w1 + b1) @ w2 + b2.

    x: [B, I] f32.  w1/b1_2d/w2_p/b2_p come from prepare_params().
    block_b=None -> single grid step (default; best on v5e/v6e and for small
    B); set e.g. block_b=B//2 on v7x to shard across its two TensorCores.
    """
    B, I = x.shape
    H = w1.shape[1]
    O_pad = w2_p.shape[1]

    # Batch tiling: default is one step covering the whole (8-aligned) batch.
    B8 = _round_up(B, 8)
    TB = B8 if block_b is None else min(_round_up(block_b, 8), B8)
    B_pad = _round_up(B8, TB)
    if B_pad != B:
        x = jnp.pad(x, ((0, B_pad - B), (0, 0)))
    n_steps = B_pad // TB

    cost = pl.CostEstimate(
        flops=2 * B_pad * (I * H + H * O_pad),
        transcendentals=0,
        bytes_accessed=4 * (x.size + w1.size + b1_2d.size + w2_p.size
                            + b2_p.size + B_pad * O_pad),
    )

    out_padded = pl.pallas_call(
        _mlp_kernel,
        out_shape=jax.ShapeDtypeStruct((B_pad, O_pad), jnp.float32),
        grid=(n_steps,),
        in_specs=[
            pl.BlockSpec((TB, I), lambda i: (i, 0)),      # x: batch-tiled
            pl.BlockSpec((I, H), lambda i: (0, 0)),       # w1: VMEM-resident
            pl.BlockSpec((1, H), lambda i: (0, 0)),       # b1: VMEM-resident
            pl.BlockSpec((H, O_pad), lambda i: (0, 0)),   # w2 (lane-padded)
            pl.BlockSpec((1, O_pad), lambda i: (0, 0)),   # b2 (lane-padded)
        ],
        out_specs=pl.BlockSpec((TB, O_pad), lambda i: (i, 0)),
        compiler_params=pltpu.CompilerParams(
            dimension_semantics=("parallel",)),
        cost_estimate=cost,
    )(x, w1, b1_2d, w2_p, b2_p)

    # Slice off batch / lane padding; stays inside this jit so it fuses with
    # whatever consumes the Q-values (argmax / TD loss) instead of being a
    # standalone pass over the padded array.
    return out_padded[:B, :out_size]


def init_params(key, input_size, hidden_size, output_size, dtype=jnp.float32):
    """Deterministic init mimicking PyTorch nn.Linear defaults
    (uniform in +-1/sqrt(fan_in)); weights returned already as [in, out]."""
    k1, k2, k3, k4 = jax.random.split(key, 4)
    bound1 = 1.0 / (input_size ** 0.5)
    bound2 = 1.0 / (hidden_size ** 0.5)
    w1 = jax.random.uniform(k1, (input_size, hidden_size), dtype,
                            minval=-bound1, maxval=bound1)
    b1 = jax.random.uniform(k2, (hidden_size,), dtype,
                            minval=-bound1, maxval=bound1)
    w2 = jax.random.uniform(k3, (hidden_size, output_size), dtype,
                            minval=-bound2, maxval=bound2)
    b2 = jax.random.uniform(k4, (output_size,), dtype,
                            minval=-bound2, maxval=bound2)
    return w1, b1, w2, b2


if __name__ == "__main__":
    # Small Q-net shapes; B deliberately not a multiple of 8 to exercise the
    # batch padding + slicing path.
    B, INPUT, HIDDEN, OUTPUT = 30, 16, 32, 4

    key = jax.random.PRNGKey(0)
    kx, kp = jax.random.split(key)
    x = jax.random.normal(kx, (B, INPUT), dtype=jnp.float32)
    w1, b1, w2, b2 = init_params(kp, INPUT, HIDDEN, OUTPUT)

    # One-time prep, amortized over the training loop's many forward calls.
    w1_p, b1_2d, w2_p, b2_p = prepare_params(w1, b1, w2, b2)

    out = linear_qnet_forward(x, w1_p, b1_2d, w2_p, b2_p, out_size=OUTPUT)
    out = jax.block_until_ready(out)
    assert out.shape == (B, OUTPUT)

    # Pure-f32 reference (exact module semantics).  Tolerance is loose enough
    # to also cover hardware where DEFAULT-precision f32 matmuls take reduced
    # bf16 MXU passes.
    ref = jnp.maximum(
        jnp.dot(x, w1, precision=jax.lax.Precision.HIGHEST) + b1, 0.0)
    ref = jnp.dot(ref, w2, precision=jax.lax.Precision.HIGHEST) + b2
    assert jnp.allclose(out, ref, atol=5e-2, rtol=5e-2), (
        float(jnp.max(jnp.abs(out - ref))))

    # TODO(synk): LinearQNet.save() (torch checkpoint I/O) is host-side and
    # intentionally not implemented as a kernel.
    print("KERNEL_OK")
</pallas_src>

<mosaic_0001>
module attributes {stable_mosaic.version = 11 : i64} {
  func.func @_mlp_kernel(%arg0: i32, %arg1: memref<32x16xf32, #tpu.memory_space<vmem>>, %arg2: memref<16x32xf32, #tpu.memory_space<vmem>>, %arg3: memref<1x32xf32, #tpu.memory_space<vmem>>, %arg4: memref<32x128xf32, #tpu.memory_space<vmem>>, %arg5: memref<1x128xf32, #tpu.memory_space<vmem>>, %arg6: memref<32x128xf32, #tpu.memory_space<vmem>>) attributes {dimension_semantics = [#tpu.dimension_semantics<parallel>], iteration_bounds = array<i64: 1>, scalar_prefetch = 0 : i64, scratch_operands = 0 : i64, tpu.core_type = #tpu.core_type<tc>, window_params = [{transform_indices = @transform_0, window_bounds = array<i64: 32, 16>}, {pipeline_mode = #tpu.pipeline_mode<synchronous>, transform_indices = @transform_1, window_bounds = array<i64: 16, 32>}, {pipeline_mode = #tpu.pipeline_mode<synchronous>, transform_indices = @transform_2, window_bounds = array<i64: 1, 32>}, {pipeline_mode = #tpu.pipeline_mode<synchronous>, transform_indices = @transform_3, window_bounds = array<i64: 32, 128>}, {pipeline_mode = #tpu.pipeline_mode<synchronous>, transform_indices = @transform_4, window_bounds = array<i64: 1, 128>}, {transform_indices = @transform_5, window_bounds = array<i64: 32, 128>}]} {
    %c0 = arith.constant 0 : index
    %c0_0 = arith.constant 0 : index
    %0 = vector.load %arg1[%c0, %c0_0] : memref<32x16xf32, #tpu.memory_space<vmem>>, vector<32x16xf32>
    %c0_1 = arith.constant 0 : index
    %c0_2 = arith.constant 0 : index
    %1 = vector.load %arg2[%c0_1, %c0_2] : memref<16x32xf32, #tpu.memory_space<vmem>>, vector<16x32xf32>
    %cst = arith.constant dense<0.000000e+00> : vector<32x32xf32>
    %2 = tpu.matmul %0, %1, %cst {dimension_numbers = #tpu.dot_dimension_numbers<[1], [0], [0], [1], [0, 0, 1, 1], [], []>} : vector<32x16xf32>, vector<16x32xf32>, vector<32x32xf32> -> vector<32x32xf32>
    %c0_3 = arith.constant 0 : index
    %c0_4 = arith.constant 0 : index
    %3 = vector.load %arg3[%c0_3, %c0_4] : memref<1x32xf32, #tpu.memory_space<vmem>>, vector<1x32xf32>
    %4 = vector.broadcast %3 : vector<1x32xf32> to vector<32x32xf32>
    %5 = arith.addf %2, %4 : vector<32x32xf32>
    %cst_5 = arith.constant 0.000000e+00 : f32
    %6 = vector.broadcast %cst_5 : f32 to vector<32x32xf32>
    %7 = arith.maximumf %5, %6 : vector<32x32xf32>
    %c0_6 = arith.constant 0 : index
    %c0_7 = arith.constant 0 : index
    %8 = vector.load %arg4[%c0_6, %c0_7] : memref<32x128xf32, #tpu.memory_space<vmem>>, vector<32x128xf32>
    %cst_8 = arith.constant dense<0.000000e+00> : vector<32x128xf32>
    %9 = tpu.matmul %7, %8, %cst_8 {dimension_numbers = #tpu.dot_dimension_numbers<[1], [0], [0], [1], [0, 0, 1, 1], [], []>} : vector<32x32xf32>, vector<32x128xf32>, vector<32x128xf32> -> vector<32x128xf32>
    %c0_9 = arith.constant 0 : index
    %c0_10 = arith.constant 0 : index
    %10 = vector.load %arg5[%c0_9, %c0_10] : memref<1x128xf32, #tpu.memory_space<vmem>>, vector<1x128xf32>
    %11 = vector.broadcast %10 : vector<1x128xf32> to vector<32x128xf32>
    %12 = arith.addf %9, %11 : vector<32x128xf32>
    %c0_11 = arith.constant 0 : index
    %c0_12 = arith.constant 0 : index
    %13 = vector.load %arg6[%c0_11, %c0_12] : memref<32x128xf32, #tpu.memory_space<vmem>>, vector<32x128xf32>
    tpu.vector_store %arg6[%c0_11, %c0_12], %12 {strides = array<i32>} : memref<32x128xf32, #tpu.memory_space<vmem>>, vector<32x128xf32>,
    return
  }
  func.func @transform_0(%arg0: i32) -> (i32, i32) {
    %c0_i32 = arith.constant 0 : i32
    %c0_i32_0 = arith.constant 0 : i32
    return %arg0, %c0_i32 : i32, i32
  }
  func.func @transform_1(%arg0: i32) -> (i32, i32) {
    %c0_i32 = arith.constant 0 : i32
    %c0_i32_0 = arith.constant 0 : i32
    %c0_i32_1 = arith.constant 0 : i32
    return %c0_i32, %c0_i32_0 : i32, i32
  }
  func.func @transform_2(%arg0: i32) -> (i32, i32) {
    %c0_i32 = arith.constant 0 : i32
    %c0_i32_0 = arith.constant 0 : i32
    %c0_i32_1 = arith.constant 0 : i32
    return %c0_i32, %c0_i32_0 : i32, i32
  }
  func.func @transform_3(%arg0: i32) -> (i32, i32) {
    %c0_i32 = arith.constant 0 : i32
    %c0_i32_0 = arith.constant 0 : i32
    %c0_i32_1 = arith.constant 0 : i32
    return %c0_i32, %c0_i32_0 : i32, i32
  }
  func.func @transform_4(%arg0: i32) -> (i32, i32) {
    %c0_i32 = arith.constant 0 : i32
    %c0_i32_0 = arith.constant 0 : i32
    %c0_i32_1 = arith.constant 0 : i32
    return %c0_i32, %c0_i32_0 : i32, i32
  }
  func.func @transform_5(%arg0: i32) -> (i32, i32) {
    %c0_i32 = arith.constant 0 : i32
    %c0_i32_0 = arith.constant 0 : i32
    return %arg0, %c0_i32 : i32, i32
  }
}

</mosaic_0001>

<llo_original>
// kernel: linear_qnet_forward.1
$region0: #{linear_qnet_forward.1}
  #allocation0 [shape = 'u32[]', space=smem, size = 0x4, offset = 0x4, fixed_abs, tag = 'smem constant byte address 0x4 - core index']
  #allocation1 [shape = 'u32[72,128]{1,0:T(1,128)}', space=vmem, size = 0x9000, scoped, tag = 'internal scratch']
  %s0 = inlined_call_operand.vmem [shape: f32[32,16], index: 0, kind: input, shape index: {}]
  %s1 = inlined_call_operand.vmem [shape: f32[16,32], index: 1, kind: input, shape index: {}]
  %s2 = inlined_call_operand.vmem [shape: f32[1,32], index: 2, kind: input, shape index: {}]
  %s3 = inlined_call_operand.vmem [shape: f32[32,128], index: 3, kind: input, shape index: {}]
  %s4 = inlined_call_operand.vmem [shape: f32[1,128], index: 4, kind: input, shape index: {}]
  %s5 = inlined_call_operand.vmem [shape: f32[32,128], index: 5, kind: output, shape index: {}]
  %s6 = sld [smem:[#allocation0]]
  $region30: #{linear_qnet_forward.1} parent=0
    _
  %s8 = ssub.s32 1, %s6
  %s9 = scalar_select 0, %s8, %s6
  // Predicated region
  $region2: #{linear_qnet_forward.1} parent=0 // pred_check
    _
  $region3: #{linear_qnet_forward.1} parent=0 // pred_check_branch
    %11 = sbr.rel (0) target = $region5
  $region4: #{linear_qnet_forward.1} parent=0 // pred_region
    _
  $region5: #{linear_qnet_forward.1} parent=0 // pred_fallthru
    _
  // Predicated region
  $region6: #{linear_qnet_forward.1} parent=0 // pred_check
    _
  $region7: #{linear_qnet_forward.1} parent=0 // pred_check_branch
    %13 = sbr.rel (0) target = $region9
  $region8: #{linear_qnet_forward.1} parent=0 // pred_region
    _
  $region9: #{linear_qnet_forward.1} parent=0 // pred_fallthru
    _
  // Predicated region
  $region10: #{linear_qnet_forward.1} parent=0 // pred_check
    _
  $region11: #{linear_qnet_forward.1} parent=0 // pred_check_branch
    %15 = sbr.rel (0) target = $region13
  $region12: #{linear_qnet_forward.1} parent=0 // pred_region
    _
  $region13: #{linear_qnet_forward.1} parent=0 // pred_fallthru
    _
  // Predicated region
  $region14: #{linear_qnet_forward.1} parent=0 // pred_check
    _
  $region15: #{linear_qnet_forward.1} parent=0 // pred_check_branch
    %17 = sbr.rel (0) target = $region17
  $region16: #{linear_qnet_forward.1} parent=0 // pred_region
    _
  $region17: #{linear_qnet_forward.1} parent=0 // pred_fallthru
    _
  // Predicated region
  $region18: #{linear_qnet_forward.1} parent=0 // pred_check
    _
  $region19: #{linear_qnet_forward.1} parent=0 // pred_check_branch
    %19 = sbr.rel (0) target = $region21
  $region20: #{linear_qnet_forward.1} parent=0 // pred_region
    _
  $region21: #{linear_qnet_forward.1} parent=0 // pred_fallthru
    _
  %v20 = vld [vmem:[%s0] sm:$0xff]
  %v21 = vld [vmem:[%s0 + $0x8] sm:$0xff]
  %v22 = vld [vmem:[%s0 + $0x10] sm:$0xff]
  %v23 = vld [vmem:[%s0 + $0x18] sm:$0xff]
  %v24 = vld [vmem:[%s1] sm:$0xff]
  %v25 = vld [vmem:[%s1 + $0x8] sm:$0xff]
  %v26 = vld [vmem:[%s2] sm:$0x1]
  %v28 = vperm.slane %v26, 0
  %vm30 = vcmask 130048
  %v32 = vsel %vm30, %v20, 0
  %v35 = vsel %vm30, %v21, 0
  %v38 = vsel %vm30, %v22, 0
  %v41 = vsel %vm30, %v23, 0
  %43 = vmatpush.msra.mxu0 0.0
  %44 = vmatpush.msra.mxu0 0.0
  %45 = vmatpush.msra.mxu0 0.0
  %46 = vmatpush.msra.mxu0 0.0
  %47 = vmatpush.msra.mxu0 0.0
  %48 = vmatpush.msra.mxu0 0.0
  %49 = vmatpush.msra.mxu0 0.0
  %50 = vmatpush.msra.mxu0 0.0
  %51 = vmatpush.msra.mxu0 0.0
  %52 = vmatpush.msra.mxu0 0.0
  %53 = vmatpush.msra.mxu0 0.0
  %54 = vmatpush.msra.mxu0 0.0
  %55 = vmatpush.msra.mxu0 0.0
  %56 = vmatpush.msra.mxu0 0.0
  %57 = vmatpush.msra.mxu0 %v25
  %58 = vmatpush.msra.mxu0 %v24
  %59 = vmatmul.f32.gmra.mxu0 %v32
  %v60 = vpop.f32.mrf.mxu0
  %v61 = vadd.f32 %v28, %v60
  %62 = vmatmul.f32.gmra.mxu0 %v35
  %v63 = vpop.f32.mrf.mxu0
  %v64 = vadd.f32 %v28, %v63
  %65 = vmatmul.f32.gmra.mxu0 %v38
  %v66 = vpop.f32.mrf.mxu0
  %v67 = vadd.f32 %v28, %v66
  %68 = vmatmul.f32.gmra.mxu0 %v41
  %v69 = vpop.f32.mrf.mxu0
  %v70 = vadd.f32 %v28, %v69
  %71 = vdwg.mxu0
  %v72 = vmax.f32 %v61, 0.0
  %v73 = vmax.f32 %v64, 0.0
  %v74 = vmax.f32 %v67, 0.0
  %v75 = vmax.f32 %v70, 0.0
  %v76 = vld [vmem:[%s3] sm:$0xff]
  %v77 = vld [vmem:[%s3 + $0x8] sm:$0xff]
  %v78 = vld [vmem:[%s3 + $0x10] sm:$0xff]
  %v79 = vld [vmem:[%s3 + $0x18] sm:$0xff]
  %v80 = vld [vmem:[%s4] sm:$0x1]
  %v82 = vperm.slane %v80, 0
  %vm84 = vcmask 261120
  %v86 = vsel %vm84, %v72, 0
  %v89 = vsel %vm84, %v73, 0
  %v92 = vsel %vm84, %v74, 0
  %v95 = vsel %vm84, %v75, 0
  %97 = vmatpush.msra.mxu0 0.0
  %98 = vmatpush.msra.mxu0 0.0
  %99 = vmatpush.msra.mxu0 0.0
  %100 = vmatpush.msra.mxu0 0.0
  %101 = vmatpush.msra.mxu0 0.0
  %102 = vmatpush.msra.mxu0 0.0
  %103 = vmatpush.msra.mxu0 0.0
  %104 = vmatpush.msra.mxu0 0.0
  %105 = vmatpush.msra.mxu0 0.0
  %106 = vmatpush.msra.mxu0 0.0
  %107 = vmatpush.msra.mxu0 0.0
  %108 = vmatpush.msra.mxu0 0.0
  %109 = vmatpush.msra.mxu0 %v79
  %110 = vmatpush.msra.mxu0 %v78
  %111 = vmatpush.msra.mxu0 %v77
  %112 = vmatpush.msra.mxu0 %v76
  %113 = vmatmul.f32.gmra.mxu0 %v86
  %v114 = vpop.f32.mrf.mxu0
  %v115 = vadd.f32 %v82, %v114
  %116 = vmatmul.f32.gmra.mxu0 %v89
  %v117 = vpop.f32.mrf.mxu0
  %v118 = vadd.f32 %v82, %v117
  %119 = vmatmul.f32.gmra.mxu0 %v92
  %v120 = vpop.f32.mrf.mxu0
  %v121 = vadd.f32 %v82, %v120
  %122 = vmatmul.f32.gmra.mxu0 %v95
  %v123 = vpop.f32.mrf.mxu0
  %v124 = vadd.f32 %v82, %v123
  %125 = vdwg.mxu0
  %126 = vst [vmem:[%s5] sm:$0xff] %v115
  %127 = vst [vmem:[%s5 + $0x8] sm:$0xff] %v118
  %128 = vst [vmem:[%s5 + $0x10] sm:$0xff] %v121
  %129 = vst [vmem:[%s5 + $0x18] sm:$0xff] %v124
  // Predicated region
  $region22: #{linear_qnet_forward.1} parent=0 // pred_check
    _
  $region23: #{linear_qnet_forward.1} parent=0 // pred_check_branch
    %131 = sbr.rel (0) target = $region25
  $region24: #{linear_qnet_forward.1} parent=0 // pred_region
    _
  $region25: #{linear_qnet_forward.1} parent=0 // pred_fallthru
    _
  // Predicated region
  $region26: #{linear_qnet_forward.1} parent=0 // pred_check
    _
  $region27: #{linear_qnet_forward.1} parent=0 // pred_check_branch
    %133 = sbr.rel (0) target = $region29
  $region28: #{linear_qnet_forward.1} parent=0 // pred_region
    _
  $region29: #{linear_qnet_forward.1} parent=0 // pred_fallthru
    _

</llo_original>
